<compile_context>
chip_gen: v6e
topology: v6e:2x2x1
jax: 0.10.0
libtpu: 0.0.40
codegen_flags: <defaults>
</compile_context>

<pallas_src>
import numpy as np
import jax
import jax.numpy as jnp
from jax.experimental import pallas as pl
from jax.experimental.pallas import tpu as pltpu

_LANE = 128                      # lane width (last dim)
_SUBLANE = 8                     # sublane width (second-last dim)
_M_TILE = 256                    # batch tile for the gridded (large-B) path
_VMEM_WEIGHT_BUDGET = 48 << 20   # keep dense lowering well under v7x's 64 MiB physical VMEM


# ----------------------------- Pallas kernel -------------------------------
def _make_decoder_kernel(relu_flags, compute_dtype=jnp.bfloat16):
    """kernel(x, W0, b0, W1, b1, ..., out): chained bf16 dot (f32 acc) + bias (+relu)."""
    n_layers = len(relu_flags)

    def kernel(*refs):
        x_ref, o_ref = refs[0], refs[-1]
        y = x_ref[...].astype(compute_dtype)
        for i, relu in enumerate(relu_flags):
            w_ref = refs[1 + 2 * i]
            b_ref = refs[2 + 2 * i]
            y = jnp.dot(y, w_ref[...], preferred_element_type=jnp.float32) + b_ref[...]
            if relu:
                y = jnp.maximum(y, 0.0)
            if i + 1 < n_layers:
                y = y.astype(compute_dtype)   # bf16 inputs for the next MXU pass
        o_ref[...] = y.astype(o_ref.dtype)

    return kernel


# ---------------------- host-side (one-time) layer lowering -----------------
def _round_up(n, m):
    return ((n + m - 1) // m) * m


def _pad2d(a, rows, cols):
    out = np.zeros((rows, cols), dtype=np.float64)
    out[:a.shape[0], :a.shape[1]] = a
    return out


def _transconv_as_matmul_np(w, l_in, stride, padding):
    """Dense (Cin*Lin, Cout*Lout) matrix equivalent to ConvTranspose1d(weight=w)."""
    c_in, c_out, k = w.shape
    l_out = (l_in - 1) * stride - 2 * padding + k
    m = np.zeros((c_in, l_in, c_out, l_out), dtype=np.float64)
    for l in range(l_in):
        for kk in range(k):
            j = l * stride - padding + kk
            if 0 <= j < l_out:
                m[:, l, :, j] += w[:, :, kk]
    return m.reshape(c_in * l_in, c_out * l_out), l_out


def _prepare_layers(params):
    """Lower every layer to (W, bias, relu); fold BN; merge fc into the first conv;
    pad N dims to 128 lanes; cast weights to bf16."""
    layers = []

    # nn.Linear(latent_dim, channels[0]): y = z @ W^T + b (then unsqueeze(2) -> L=1)
    fc_w = np.asarray(params["fc_w"], np.float64)
    fc_b = np.asarray(params["fc_b"], np.float64)
    layers.append((fc_w.T, fc_b, False))
    l_cur = 1

    for blk in params["blocks"]:
        w = np.asarray(blk["w"], np.float64)
        m, l_out = _transconv_as_matmul_np(w, l_cur, blk["stride"], blk["padding"])
        scale_ch = np.asarray(blk["bn_gamma"], np.float64) / np.sqrt(
            np.asarray(blk["bn_var"], np.float64) + blk["bn_eps"])
        shift_ch = (np.asarray(blk["bn_beta"], np.float64)
                    + scale_ch * (np.asarray(blk["b"], np.float64)
                                  - np.asarray(blk["bn_mean"], np.float64)))
        layers.append((m * np.repeat(scale_ch, l_out)[None, :],
                       np.repeat(shift_ch, l_out), True))
        l_cur = l_out

    w = np.asarray(params["final_w"], np.float64)
    c_out = w.shape[1]
    m, l_out = _transconv_as_matmul_np(w, l_cur, int(params["final_stride"]),
                                       int(params["final_padding"]))
    layers.append((m, np.repeat(np.asarray(params["final_b"], np.float64), l_out), False))

    # Merge any linear stage not followed by a nonlinearity into the next stage
    # (the fc layer -> first transconv); removes one full MXU pass + weight DMA.
    merged = []
    pending = None
    for idx, (W, b, relu) in enumerate(layers):
        if pending is not None:
            Wp, bp = pending
            b = bp @ W + b
            W = Wp @ W
            pending = None
        if (not relu) and idx + 1 < len(layers):
            pending = (W, b)
        else:
            merged.append((W, b, relu))

    # Pad so layer i's padded N == layer i+1's K.  Zero padding keeps the chain exact
    # (padded activation cols carry 0, padded W rows are 0, relu(0)=0).  The first K
    # stays at latent_dim so z needs no host-side padding.
    Ws, bs, relus = [], [], []
    k_rows = merged[0][0].shape[0]
    total_w_bytes = 0
    for W, b, relu in merged:
        n_pad = _round_up(W.shape[1], _LANE)
        Wp = _pad2d(W, k_rows, n_pad)
        total_w_bytes += Wp.size * 2  # bf16
        Ws.append(jnp.asarray(Wp, dtype=jnp.bfloat16))
        bs.append(jnp.asarray(_pad2d(b[None, :], 1, n_pad), dtype=jnp.float32))
        relus.append(relu)
        k_rows = n_pad

    if total_w_bytes > _VMEM_WEIGHT_BUDGET:
        # TODO(synk): switch to a (B*Lin,Cin)@(Cin,Cout*K) GEMM + overlap-add with N-tiling
        #             before sequence lengths grow past VMEM capacity.
        raise ValueError(
            f"dense transconv-as-matmul lowering needs {total_w_bytes} B of weights, "
            f"exceeding the {_VMEM_WEIGHT_BUDGET} B VMEM budget")
    return Ws, bs, tuple(relus), (c_out, l_out)


def build_decoder(params):
    """Returns a jitted forward(z) -> (B, output_channels, L_out) using one Pallas call."""
    Ws, bs, relu_flags, (c_out, l_out) = _prepare_layers(params)
    kernel = _make_decoder_kernel(relu_flags)
    n_last_pad = Ws[-1].shape[1]
    n_inputs = 1 + 2 * len(Ws)
    weight_bytes = sum(int(np.prod(w.shape)) * 2 for w in Ws) \
        + sum(int(np.prod(b.shape)) * 4 for b in bs)

    @jax.jit
    def forward(z):
        B, D = z.shape
        z = z.astype(jnp.float32)
        args = [z]
        for W, b in zip(Ws, bs):       # closed-over constants: baked into the compiled kernel
            args.append(W)
            args.append(b)

        tile_rows = min(B, _M_TILE)
        io_bytes = tile_rows * (D + n_last_pad) * 4
        vmem_limit = int(min(max(2 * (weight_bytes + io_bytes) + (2 << 20), 16 << 20),
                             64 << 20))

        if B > _M_TILE:
            # Large-batch path: grid over M, weights VMEM-resident, parallel for megacore.
            in_specs = [pl.BlockSpec((_M_TILE, D), lambda i: (i, 0))]
            for W, b in zip(Ws, bs):
                in_specs.append(pl.BlockSpec(tuple(W.shape), lambda i: (0, 0)))
                in_specs.append(pl.BlockSpec(tuple(b.shape), lambda i: (0, 0)))
            out = pl.pallas_call(
                kernel,
                grid=(pl.cdiv(B, _M_TILE),),
                out_shape=jax.ShapeDtypeStruct((B, n_last_pad), jnp.float32),
                in_specs=in_specs,
                out_specs=pl.BlockSpec((_M_TILE, n_last_pad), lambda i: (i, 0)),
                compiler_params=pltpu.CompilerParams(
                    dimension_semantics=("parallel",),
                    vmem_limit_bytes=vmem_limit),
            )(*args)
        else:
            # Small-batch path: gridless, everything VMEM/vreg-resident.
            out = pl.pallas_call(
                kernel,
                out_shape=jax.ShapeDtypeStruct((B, n_last_pad), jnp.float32),
                in_specs=[pl.BlockSpec(memory_space=pltpu.MemorySpace.VMEM)] * n_inputs,
                out_specs=pl.BlockSpec(memory_space=pltpu.MemorySpace.VMEM),
                compiler_params=pltpu.CompilerParams(vmem_limit_bytes=vmem_limit),
            )(*args)
        return out[:, :c_out * l_out].reshape(B, c_out, l_out)

    return forward


# ------------------------------- params -------------------------------------
def init_decoder_params(key, latent_dim, channels, kernel_sizes, strides, paddings,
                        output_channels):
    params = {}
    key, k1, k2 = jax.random.split(key, 3)
    params["fc_w"] = 0.1 * jax.random.normal(k1, (channels[0], latent_dim), jnp.float32)
    params["fc_b"] = 0.1 * jax.random.normal(k2, (channels[0],), jnp.float32)

    blocks = []
    for c_in, c_out, ks, st, pd in zip(channels[:-1], channels[1:],
                                       kernel_sizes, strides, paddings):
        key, kw, kb = jax.random.split(key, 3)
        blocks.append(dict(
            w=0.1 * jax.random.normal(kw, (c_in, c_out, ks), jnp.float32),
            b=0.1 * jax.random.normal(kb, (c_out,), jnp.float32),
            stride=st, padding=pd,
            bn_gamma=jnp.ones((c_out,), jnp.float32),
            bn_beta=jnp.zeros((c_out,), jnp.float32),
            bn_mean=jnp.zeros((c_out,), jnp.float32),
            bn_var=jnp.ones((c_out,), jnp.float32),
            bn_eps=1e-5,
        ))
    params["blocks"] = blocks

    key, kw, kb = jax.random.split(key, 3)
    params["final_w"] = 0.1 * jax.random.normal(
        kw, (channels[-1], output_channels, 3), jnp.float32)
    params["final_b"] = 0.1 * jax.random.normal(kb, (output_channels,), jnp.float32)
    params["final_stride"] = 1     # matches nn.ConvTranspose1d(..., kernel_size=3, stride=1,
    params["final_padding"] = 1    #                            padding=1)
    return params


# --------------------------- numpy reference --------------------------------
def ref_transconv1d(x, w, b, stride, padding):
    B, c_in, l_in = x.shape
    _, c_out, k = w.shape
    l_out = (l_in - 1) * stride - 2 * padding + k
    out = np.zeros((B, c_out, l_out), dtype=np.float64)
    for bi in range(B):
        for l in range(l_in):
            for kk in range(k):
                j = l * stride - padding + kk
                if 0 <= j < l_out:
                    out[bi, :, j] += np.asarray(x[bi, :, l]) @ np.asarray(w[:, :, kk])
    out += np.asarray(b)[None, :, None]
    return out


def ref_decoder(z, params):
    z = np.asarray(z, np.float64)
    x = z @ np.asarray(params["fc_w"]).T + np.asarray(params["fc_b"])
    x = x[:, :, None]
    for blk in params["blocks"]:
        x = ref_transconv1d(x, blk["w"], blk["b"], blk["stride"], blk["padding"])
        scale = np.asarray(blk["bn_gamma"]) / np.sqrt(np.asarray(blk["bn_var"]) + blk["bn_eps"])
        x = (x - np.asarray(blk["bn_mean"])[None, :, None]) * scale[None, :, None] \
            + np.asarray(blk["bn_beta"])[None, :, None]
        x = np.maximum(x, 0.0)
    x = ref_transconv1d(x, params["final_w"], params["final_b"],
                        int(params["final_stride"]), int(params["final_padding"]))
    return x


# --------------------------------- main --------------------------------------
if __name__ == "__main__":
    B = 2
    latent_dim = 32
    channels = [64, 32, 16]
    kernel_sizes = [4, 4]
    strides = [2, 2]
    paddings = [1, 1]
    output_channels = 4

    key = jax.random.PRNGKey(0)
    key, kz = jax.random.split(key)
    z = jax.random.normal(kz, (B, latent_dim), jnp.float32)

    params = init_decoder_params(key, latent_dim, channels, kernel_sizes,
                                 strides, paddings, output_channels)

    decoder = build_decoder(params)
    out = decoder(z)
    out = jax.block_until_ready(out)

    ref = ref_decoder(z, params)
    assert out.shape == ref.shape, (out.shape, ref.shape)
    # Tolerance sized for bf16 MXU inputs (f32 accumulation); observed error ~1e-3.
    np.testing.assert_allclose(np.asarray(out), ref, rtol=2e-2, atol=2e-2)

    print("KERNEL_OK")
</pallas_src>

<mosaic_0001>
module attributes {stable_mosaic.version = 11 : i64} {
  func.func @kernel(%arg0: memref<2x32xf32, #tpu.memory_space<vmem>>, %arg1: memref<32x128xbf16, #tpu.memory_space<vmem>>, %arg2: memref<1x128xf32, #tpu.memory_space<vmem>>, %arg3: memref<128x128xbf16, #tpu.memory_space<vmem>>, %arg4: memref<1x128xf32, #tpu.memory_space<vmem>>, %arg5: memref<128x128xbf16, #tpu.memory_space<vmem>>, %arg6: memref<1x128xf32, #tpu.memory_space<vmem>>, %arg7: memref<2x128xf32, #tpu.memory_space<vmem>>) attributes {dimension_semantics = [], scalar_prefetch = 0 : i64, scratch_operands = 0 : i64, tpu.core_type = #tpu.core_type<tc>} {
    %c0 = arith.constant 0 : index
    %c0_0 = arith.constant 0 : index
    %0 = vector.load %arg0[%c0, %c0_0] : memref<2x32xf32, #tpu.memory_space<vmem>>, vector<2x32xf32>
    %1 = arith.truncf %0 : vector<2x32xf32> to vector<2x32xbf16>
    %c0_1 = arith.constant 0 : index
    %c0_2 = arith.constant 0 : index
    %2 = vector.load %arg1[%c0_1, %c0_2] : memref<32x128xbf16, #tpu.memory_space<vmem>>, vector<32x128xbf16>
    %cst = arith.constant dense<0.000000e+00> : vector<2x128xf32>
    %3 = tpu.matmul %1, %2, %cst {dimension_numbers = #tpu.dot_dimension_numbers<[1], [0], [0], [1], [0, 0, 1, 1], [], []>} : vector<2x32xbf16>, vector<32x128xbf16>, vector<2x128xf32> -> vector<2x128xf32>
    %c0_3 = arith.constant 0 : index
    %c0_4 = arith.constant 0 : index
    %4 = vector.load %arg2[%c0_3, %c0_4] : memref<1x128xf32, #tpu.memory_space<vmem>>, vector<1x128xf32>
    %5 = vector.broadcast %4 : vector<1x128xf32> to vector<2x128xf32>
    %6 = arith.addf %3, %5 : vector<2x128xf32>
    %cst_5 = arith.constant 0.000000e+00 : f32
    %7 = vector.broadcast %cst_5 : f32 to vector<2x128xf32>
    %8 = arith.maximumf %6, %7 : vector<2x128xf32>
    %9 = arith.truncf %8 : vector<2x128xf32> to vector<2x128xbf16>
    %c0_6 = arith.constant 0 : index
    %c0_7 = arith.constant 0 : index
    %10 = vector.load %arg3[%c0_6, %c0_7] : memref<128x128xbf16, #tpu.memory_space<vmem>>, vector<128x128xbf16>
    %cst_8 = arith.constant dense<0.000000e+00> : vector<2x128xf32>
    %11 = tpu.matmul %9, %10, %cst_8 {dimension_numbers = #tpu.dot_dimension_numbers<[1], [0], [0], [1], [0, 0, 1, 1], [], []>} : vector<2x128xbf16>, vector<128x128xbf16>, vector<2x128xf32> -> vector<2x128xf32>
    %c0_9 = arith.constant 0 : index
    %c0_10 = arith.constant 0 : index
    %12 = vector.load %arg4[%c0_9, %c0_10] : memref<1x128xf32, #tpu.memory_space<vmem>>, vector<1x128xf32>
    %13 = vector.broadcast %12 : vector<1x128xf32> to vector<2x128xf32>
    %14 = arith.addf %11, %13 : vector<2x128xf32>
    %cst_11 = arith.constant 0.000000e+00 : f32
    %15 = vector.broadcast %cst_11 : f32 to vector<2x128xf32>
    %16 = arith.maximumf %14, %15 : vector<2x128xf32>
    %17 = arith.truncf %16 : vector<2x128xf32> to vector<2x128xbf16>
    %c0_12 = arith.constant 0 : index
    %c0_13 = arith.constant 0 : index
    %18 = vector.load %arg5[%c0_12, %c0_13] : memref<128x128xbf16, #tpu.memory_space<vmem>>, vector<128x128xbf16>
    %cst_14 = arith.constant dense<0.000000e+00> : vector<2x128xf32>
    %19 = tpu.matmul %17, %18, %cst_14 {dimension_numbers = #tpu.dot_dimension_numbers<[1], [0], [0], [1], [0, 0, 1, 1], [], []>} : vector<2x128xbf16>, vector<128x128xbf16>, vector<2x128xf32> -> vector<2x128xf32>
    %c0_15 = arith.constant 0 : index
    %c0_16 = arith.constant 0 : index
    %20 = vector.load %arg6[%c0_15, %c0_16] : memref<1x128xf32, #tpu.memory_space<vmem>>, vector<1x128xf32>
    %21 = vector.broadcast %20 : vector<1x128xf32> to vector<2x128xf32>
    %22 = arith.addf %19, %21 : vector<2x128xf32>
    %c0_17 = arith.constant 0 : index
    %c0_18 = arith.constant 0 : index
    %23 = vector.load %arg7[%c0_17, %c0_18] : memref<2x128xf32, #tpu.memory_space<vmem>>, vector<2x128xf32>
    tpu.vector_store %arg7[%c0_17, %c0_18], %22 {strides = array<i32>} : memref<2x128xf32, #tpu.memory_space<vmem>>, vector<2x128xf32>,
    return
  }
}

</mosaic_0001>

<llo_original>
// kernel: forward.1
$region0: #{forward.1}
  #allocation0 [shape = 'u32[]', space=smem, size = 0x4, offset = 0x4, fixed_abs, tag = 'smem constant byte address 0x4 - core index']
  #allocation1 [shape = 'u32[144,128]{1,0:T(1,128)}', space=vmem, size = 0x12000, scoped, tag = 'internal scratch']
  %s0 = inlined_call_operand.hbm [shape: f32[2,32], index: 0, kind: input, shape index: {}]
  %s1 = inlined_call_operand.hbm [shape: bf16[32,128], index: 1, kind: input, shape index: {}]
  %s2 = inlined_call_operand.vmem [shape: f32[1,128], index: 2, kind: input, shape index: {}]
  %s3 = inlined_call_operand.hbm [shape: bf16[128,128], index: 3, kind: input, shape index: {}]
  %s4 = inlined_call_operand.vmem [shape: f32[1,128], index: 4, kind: input, shape index: {}]
  %s5 = inlined_call_operand.hbm [shape: bf16[128,128], index: 5, kind: input, shape index: {}]
  %s6 = inlined_call_operand.vmem [shape: f32[1,128], index: 6, kind: input, shape index: {}]
  %s7 = inlined_call_operand.vmem [shape: f32[2,128], index: 7, kind: output, shape index: {}]
  %s8 = sld [smem:[#allocation0]]
  $region54: #{forward.1} parent=0
    _
  %s10 = ssub.s32 1, %s8
  %s11 = scalar_select 0, %s10, %s8
  $region1: #{forward.1} parent=0
    #allocation2 [shape = 'u8[1024]{0}', space=vmem, size = 0x400, scoped, tag = 'input window, operand 0, single buffered']
    #allocation3 [shape = 's32[1]{0}', space=sflag, size = 0x4, scoped, tag = 'scoped memory for forward.1']
    #allocation4 [shape = 'u8[8192]{0}', space=vmem, size = 0x2000, scoped, tag = 'input window, operand 1, single buffered']
    #allocation5 [shape = 's32[1]{0}', space=sflag, size = 0x4, scoped, tag = 'scoped memory for forward.1']
    #allocation6 [shape = 'u8[32768]{0}', space=vmem, size = 0x8000, scoped, tag = 'input window, operand 3, single buffered']
    #allocation7 [shape = 'u8[32768]{0}', space=vmem, size = 0x8000, scoped, tag = 'input window, operand 5, single buffered']
    #allocation8 [shape = 's32[1]{0}', space=sflag, size = 0x4, scoped, tag = 'scoped memory for forward.1']
    %12 = vsyncpa [#allocation3], 0
    %13 = vsyncpa [#allocation5], 0
    %14 = vsyncpa [#allocation8], 0
    // Predicated region
    $region2: #{forward.1} parent=1 // pred_check
      _
    $region3: #{forward.1} parent=1 // pred_check_branch
      %16 = sbr.rel (0) target = $region5
    $region4: #{forward.1} parent=1 // pred_region
      %s18 = ssub.s32 32, 32
      %19 = vsyncadd [#allocation3], %s18
      %s21 = sshll.u32 [#allocation2], 4
      %s22 = int_to_ptr.vmem [resolvable:$true] %s21
      %24 = dma.hbm_to_vmem [thread:$0]  %s0, 32, %s22, [#allocation3]
    $region5: #{forward.1} parent=1 // pred_fallthru
      _
    // Predicated region
    $region6: #{forward.1} parent=1 // pred_check
      _
    $region7: #{forward.1} parent=1 // pred_check_branch
      %26 = sbr.rel (0) target = $region9
    $region8: #{forward.1} parent=1 // pred_region
      %s28 = ssub.s32 256, 256
      %29 = vsyncadd [#allocation5], %s28
      %s30 = sshll.u32 [#allocation4], 4
      %s31 = int_to_ptr.vmem [resolvable:$true] %s30
      %36 = dma.hbm_to_vmem [thread:$0]  %s1, 256, %s31, [#allocation5], 64, 64, 4
    $region9: #{forward.1} parent=1 // pred_fallthru
      _
    // Predicated region
    $region10: #{forward.1} parent=1 // pred_check
      _
    $region11: #{forward.1} parent=1 // pred_check_branch
      %38 = sbr.rel (0) target = $region13
    $region12: #{forward.1} parent=1 // pred_region
      _
    $region13: #{forward.1} parent=1 // pred_fallthru
      _
    // Predicated region
    $region14: #{forward.1} parent=1 // pred_check
      _
    $region15: #{forward.1} parent=1 // pred_check_branch
      %40 = sbr.rel (0) target = $region17
    $region16: #{forward.1} parent=1 // pred_region
      %s42 = ssub.s32 1024, 1024
      %43 = vsyncadd [#allocation5], %s42
      %s44 = sshll.u32 [#allocation6], 4
      %s45 = int_to_ptr.vmem [resolvable:$true] %s44
      %50 = dma.hbm_to_vmem [thread:$0]  %s3, 1024, %s45, [#allocation5], 64, 64, 4
    $region17: #{forward.1} parent=1 // pred_fallthru
      _
    // Predicated region
    $region18: #{forward.1} parent=1 // pred_check
      _
    $region19: #{forward.1} parent=1 // pred_check_branch
      %52 = sbr.rel (0) target = $region21
    $region20: #{forward.1} parent=1 // pred_region
      _
    $region21: #{forward.1} parent=1 // pred_fallthru
      _
    // Predicated region
    $region22: #{forward.1} parent=1 // pred_check
      _
    $region23: #{forward.1} parent=1 // pred_check_branch
      %54 = sbr.rel (0) target = $region25
    $region24: #{forward.1} parent=1 // pred_region
      %s56 = ssub.s32 1024, 1024
      %57 = vsyncadd [#allocation8], %s56
      %s58 = sshll.u32 [#allocation7], 4
      %s59 = int_to_ptr.vmem [resolvable:$true] %s58
      %64 = dma.hbm_to_vmem [thread:$0]  %s5, 1024, %s59, [#allocation8], 64, 64, 4
    $region25: #{forward.1} parent=1 // pred_fallthru
      _
    // Predicated region
    $region26: #{forward.1} parent=1 // pred_check
      _
    $region27: #{forward.1} parent=1 // pred_check_branch
      %66 = sbr.rel (0) target = $region29
    $region28: #{forward.1} parent=1 // pred_region
      _
    $region29: #{forward.1} parent=1 // pred_fallthru
      _
    // Predicated region
    $region30: #{forward.1} parent=1 // pred_check
      _
    $region31: #{forward.1} parent=1 // pred_check_branch
      %68 = sbr.rel (0) target = $region33
    $region32: #{forward.1} parent=1 // pred_region
      %69 = dma.done [#allocation3], 32
    $region33: #{forward.1} parent=1 // pred_fallthru
      _
    // Predicated region
    $region34: #{forward.1} parent=1 // pred_check
      _
    $region35: #{forward.1} parent=1 // pred_check_branch
      %71 = sbr.rel (0) target = $region37
    $region36: #{forward.1} parent=1 // pred_region
      %72 = dma.done [#allocation5], 256
    $region37: #{forward.1} parent=1 // pred_fallthru
      _
    // Predicated region
    $region38: #{forward.1} parent=1 // pred_check
      _
    $region39: #{forward.1} parent=1 // pred_check_branch
      %74 = sbr.rel (0) target = $region41
    $region40: #{forward.1} parent=1 // pred_region
      %75 = dma.done [#allocation5], 1024
    $region41: #{forward.1} parent=1 // pred_fallthru
      _
    // Predicated region
    $region42: #{forward.1} parent=1 // pred_check
      _
    $region43: #{forward.1} parent=1 // pred_check_branch
      %77 = sbr.rel (0) target = $region45
    $region44: #{forward.1} parent=1 // pred_region
      %78 = dma.done [#allocation8], 1024
    $region45: #{forward.1} parent=1 // pred_fallthru
      _
    %v80 = vld [vmem:[#allocation2] sm:$0x3]
    %v81 = vpack.c.bf16 %v80, %v80
    %v82 = vld [vmem:[#allocation4] sm:$0xf]
    %v83 = vld [vmem:[#allocation4 + $0x4] sm:$0xf]
    %v84 = vld [vmem:[#allocation4 + $0x8] sm:$0xf]
    %v85 = vld [vmem:[#allocation4 + $0xc] sm:$0xf]
    %v86 = vld [vmem:[%s2] sm:$0x1]
    %v88 = vlaneseq
    %v89 = vshrl.u32 %v88, 7
    %v90 = vsub.s32 0, %v89
    %v91 = vrot.slane %v86, %v90
    %v97 = vunpack.c.l.b16 %v82
    %v98 = vunpack.c.l.b16 %v83
    %v99 = vunpack.c.l.b16 %v84
    %v100 = vunpack.c.l.b16 %v85
    %v101 = vpack.c.b16 %v98, %v97
    %v102 = vpack.c.b16 %v100, %v99
    %vm105 = vcmask 261120
    %v107 = vsel %vm105, %v81, 0
    %109 = vmatprep.subr.bf16.mxu0 0
    %110 = vmatpush1.bf16.msra.mxu0 0
    %111 = vmatprep.subr.bf16.mxu0 0
    %112 = vmatpush1.bf16.msra.mxu0 0
    %113 = vmatprep.subr.bf16.mxu0 0
    %114 = vmatpush1.bf16.msra.mxu0 0
    %115 = vmatprep.subr.bf16.mxu0 0
    %116 = vmatpush1.bf16.msra.mxu0 0
    %117 = vmatprep.subr.bf16.mxu0 0
    %118 = vmatpush1.bf16.msra.mxu0 0
    %119 = vmatprep.subr.bf16.mxu0 0
    %120 = vmatpush1.bf16.msra.mxu0 0
    %121 = vmatprep.subr.bf16.mxu0 0
    %122 = vmatpush1.bf16.msra.mxu0 %v102
    %123 = vmatprep.subr.bf16.mxu0 0
    %124 = vmatpush1.bf16.msra.mxu0 %v101
    %125 = vmatprep.subr.bf16.mxu0 0
    %126 = vmatpush2.bf16.msra.mxu0 0
    %127 = vmatprep.subr.bf16.mxu0 0
    %128 = vmatpush2.bf16.msra.mxu0 0
    %129 = vmatprep.subr.bf16.mxu0 0
    %130 = vmatpush2.bf16.msra.mxu0 0
    %131 = vmatprep.subr.bf16.mxu0 0
    %132 = vmatpush2.bf16.msra.mxu0 0
    %133 = vmatprep.subr.bf16.mxu0 0
    %134 = vmatpush2.bf16.msra.mxu0 0
    %135 = vmatprep.subr.bf16.mxu0 0
    %136 = vmatpush2.bf16.msra.mxu0 0
    %137 = vmatprep.subr.bf16.mxu0 0
    %138 = vmatpush2.bf16.msra.mxu0 0
    %139 = vmatprep.subr.bf16.mxu0 0
    %140 = vmatpush2.bf16.msra.mxu0 0
    %141 = vmatprep.mubr.bf16.mxu0 0
    %142 = vmatmul.mubr.bf16.gmra.mxu0 %v107
    %v143 = vpop.f32.mrf.mxu0
    %v144 = vadd.f32 %v91, %v143
    %v145 = vpop.f32.mrf.mxu0
    %v146 = vpop.f32.mrf.mxu0
    %v147 = vpop.f32.mrf.mxu0
    %148 = vdwg.mxu0
    %v149 = vmax.f32 %v144, 0.0
    %v150 = vpack.c.bf16 %v149, %v149
    %v151 = vld [vmem:[#allocation6] sm:$0xf]
    %v152 = vld [vmem:[#allocation6 + $0x4] sm:$0xf]
    %v153 = vld [vmem:[#allocation6 + $0x8] sm:$0xf]
    %v154 = vld [vmem:[#allocation6 + $0xc] sm:$0xf]
    %v155 = vld [vmem:[#allocation6 + $0x10] sm:$0xf]
    %v156 = vld [vmem:[#allocation6 + $0x14] sm:$0xf]
    %v157 = vld [vmem:[#allocation6 + $0x18] sm:$0xf]
    %v158 = vld [vmem:[#allocation6 + $0x1c] sm:$0xf]
    %v159 = vld [vmem:[#allocation6 + $0x20] sm:$0xf]
    %v160 = vld [vmem:[#allocation6 + $0x24] sm:$0xf]
    %v161 = vld [vmem:[#allocation6 + $0x28] sm:$0xf]
    %v162 = vld [vmem:[#allocation6 + $0x2c] sm:$0xf]
    %v163 = vld [vmem:[#allocation6 + $0x30] sm:$0xf]
    %v164 = vld [vmem:[#allocation6 + $0x34] sm:$0xf]
    %v165 = vld [vmem:[#allocation6 + $0x38] sm:$0xf]
    %v166 = vld [vmem:[#allocation6 + $0x3c] sm:$0xf]
    %v167 = vld [vmem:[%s4] sm:$0x1]
    %v169 = vlaneseq
    %v170 = vshrl.u32 %v169, 7
    %v171 = vsub.s32 0, %v170
    %v172 = vrot.slane %v167, %v171
    %v190 = vunpack.c.l.b16 %v151
    %v191 = vunpack.c.l.b16 %v152
    %v192 = vunpack.c.l.b16 %v153
    %v193 = vunpack.c.l.b16 %v154
    %v194 = vunpack.c.l.b16 %v155
    %v195 = vunpack.c.l.b16 %v156
    %v196 = vunpack.c.l.b16 %v157
    %v197 = vunpack.c.l.b16 %v158
    %v198 = vunpack.c.l.b16 %v159
    %v199 = vunpack.c.l.b16 %v160
    %v200 = vunpack.c.l.b16 %v161
    %v201 = vunpack.c.l.b16 %v162
    %v202 = vunpack.c.l.b16 %v163
    %v203 = vunpack.c.l.b16 %v164
    %v204 = vunpack.c.l.b16 %v165
    %v205 = vunpack.c.l.b16 %v166
    %v206 = vpack.c.b16 %v191, %v190
    %v207 = vpack.c.b16 %v193, %v192
    %v208 = vpack.c.b16 %v195, %v194
    %v209 = vpack.c.b16 %v197, %v196
    %v210 = vpack.c.b16 %v199, %v198
    %v211 = vpack.c.b16 %v201, %v200
    %v212 = vpack.c.b16 %v203, %v202
    %v213 = vpack.c.b16 %v205, %v204
    %222 = vmatprep.subr.bf16.mxu0 0
    %223 = vmatpush1.bf16.msra.mxu0 %v213
    %224 = vmatprep.subr.bf16.mxu0 0
    %225 = vmatpush1.bf16.msra.mxu0 %v212
    %226 = vmatprep.subr.bf16.mxu0 0
    %227 = vmatpush1.bf16.msra.mxu0 %v211
    %228 = vmatprep.subr.bf16.mxu0 0
    %229 = vmatpush1.bf16.msra.mxu0 %v210
    %230 = vmatprep.subr.bf16.mxu0 0
    %231 = vmatpush1.bf16.msra.mxu0 %v209
    %232 = vmatprep.subr.bf16.mxu0 0
    %233 = vmatpush1.bf16.msra.mxu0 %v208
    %234 = vmatprep.subr.bf16.mxu0 0
    %235 = vmatpush1.bf16.msra.mxu0 %v207
    %236 = vmatprep.subr.bf16.mxu0 0
    %237 = vmatpush1.bf16.msra.mxu0 %v206
    %238 = vmatprep.subr.bf16.mxu0 0
    %239 = vmatpush2.bf16.msra.mxu0 0
    %240 = vmatprep.subr.bf16.mxu0 0
    %241 = vmatpush2.bf16.msra.mxu0 0
    %242 = vmatprep.subr.bf16.mxu0 0
    %243 = vmatpush2.bf16.msra.mxu0 0
    %244 = vmatprep.subr.bf16.mxu0 0
    %245 = vmatpush2.bf16.msra.mxu0 0
    %246 = vmatprep.subr.bf16.mxu0 0
    %247 = vmatpush2.bf16.msra.mxu0 0
    %248 = vmatprep.subr.bf16.mxu0 0
    %249 = vmatpush2.bf16.msra.mxu0 0
    %250 = vmatprep.subr.bf16.mxu0 0
    %251 = vmatpush2.bf16.msra.mxu0 0
    %252 = vmatprep.subr.bf16.mxu0 0
    %253 = vmatpush2.bf16.msra.mxu0 0
    %254 = vmatprep.mubr.bf16.mxu0 0
    %255 = vmatmul.mubr.bf16.gmra.mxu0 %v150
    %v256 = vpop.f32.mrf.mxu0
    %v257 = vadd.f32 %v172, %v256
    %v258 = vpop.f32.mrf.mxu0
    %v259 = vpop.f32.mrf.mxu0
    %v260 = vpop.f32.mrf.mxu0
    %261 = vdwg.mxu0
    %v262 = vmax.f32 %v257, 0.0
    %v263 = vpack.c.bf16 %v262, %v262
    %v264 = vld [vmem:[#allocation7] sm:$0xf]
    %v265 = vld [vmem:[#allocation7 + $0x4] sm:$0xf]
    %v266 = vld [vmem:[#allocation7 + $0x8] sm:$0xf]
    %v267 = vld [vmem:[#allocation7 + $0xc] sm:$0xf]
    %v268 = vld [vmem:[#allocation7 + $0x10] sm:$0xf]
    %v269 = vld [vmem:[#allocation7 + $0x14] sm:$0xf]
    %v270 = vld [vmem:[#allocation7 + $0x18] sm:$0xf]
    %v271 = vld [vmem:[#allocation7 + $0x1c] sm:$0xf]
    %v272 = vld [vmem:[#allocation7 + $0x20] sm:$0xf]
    %v273 = vld [vmem:[#allocation7 + $0x24] sm:$0xf]
    %v274 = vld [vmem:[#allocation7 + $0x28] sm:$0xf]
    %v275 = vld [vmem:[#allocation7 + $0x2c] sm:$0xf]
    %v276 = vld [vmem:[#allocation7 + $0x30] sm:$0xf]
    %v277 = vld [vmem:[#allocation7 + $0x34] sm:$0xf]
    %v278 = vld [vmem:[#allocation7 + $0x38] sm:$0xf]
    %v279 = vld [vmem:[#allocation7 + $0x3c] sm:$0xf]
    %v280 = vld [vmem:[%s6] sm:$0x1]
    %v282 = vlaneseq
    %v283 = vshrl.u32 %v282, 7
    %v284 = vsub.s32 0, %v283
    %v285 = vrot.slane %v280, %v284
    %v303 = vunpack.c.l.b16 %v264
    %v304 = vunpack.c.l.b16 %v265
    %v305 = vunpack.c.l.b16 %v266
    %v306 = vunpack.c.l.b16 %v267
    %v307 = vunpack.c.l.b16 %v268
    %v308 = vunpack.c.l.b16 %v269
    %v309 = vunpack.c.l.b16 %v270
    %v310 = vunpack.c.l.b16 %v271
    %v311 = vunpack.c.l.b16 %v272
    %v312 = vunpack.c.l.b16 %v273
    %v313 = vunpack.c.l.b16 %v274
    %v314 = vunpack.c.l.b16 %v275
    %v315 = vunpack.c.l.b16 %v276
    %v316 = vunpack.c.l.b16 %v277
    %v317 = vunpack.c.l.b16 %v278
    %v318 = vunpack.c.l.b16 %v279
    %v319 = vpack.c.b16 %v304, %v303
    %v320 = vpack.c.b16 %v306, %v305
    %v321 = vpack.c.b16 %v308, %v307
    %v322 = vpack.c.b16 %v310, %v309
    %v323 = vpack.c.b16 %v312, %v311
    %v324 = vpack.c.b16 %v314, %v313
    %v325 = vpack.c.b16 %v316, %v315
    %v326 = vpack.c.b16 %v318, %v317
    %335 = vmatprep.subr.bf16.mxu0 0
    %336 = vmatpush1.bf16.msra.mxu0 %v326
    %337 = vmatprep.subr.bf16.mxu0 0
    %338 = vmatpush1.bf16.msra.mxu0 %v325
    %339 = vmatprep.subr.bf16.mxu0 0
    %340 = vmatpush1.bf16.msra.mxu0 %v324
    %341 = vmatprep.subr.bf16.mxu0 0
    %342 = vmatpush1.bf16.msra.mxu0 %v323
    %343 = vmatprep.subr.bf16.mxu0 0
    %344 = vmatpush1.bf16.msra.mxu0 %v322
    %345 = vmatprep.subr.bf16.mxu0 0
    %346 = vmatpush1.bf16.msra.mxu0 %v321
    %347 = vmatprep.subr.bf16.mxu0 0
    %348 = vmatpush1.bf16.msra.mxu0 %v320
    %349 = vmatprep.subr.bf16.mxu0 0
    %350 = vmatpush1.bf16.msra.mxu0 %v319
    %351 = vmatprep.subr.bf16.mxu0 0
    %352 = vmatpush2.bf16.msra.mxu0 0
    %353 = vmatprep.subr.bf16.mxu0 0
    %354 = vmatpush2.bf16.msra.mxu0 0
    %355 = vmatprep.subr.bf16.mxu0 0
    %356 = vmatpush2.bf16.msra.mxu0 0
    %357 = vmatprep.subr.bf16.mxu0 0
    %358 = vmatpush2.bf16.msra.mxu0 0
    %359 = vmatprep.subr.bf16.mxu0 0
    %360 = vmatpush2.bf16.msra.mxu0 0
    %361 = vmatprep.subr.bf16.mxu0 0
    %362 = vmatpush2.bf16.msra.mxu0 0
    %363 = vmatprep.subr.bf16.mxu0 0
    %364 = vmatpush2.bf16.msra.mxu0 0
    %365 = vmatprep.subr.bf16.mxu0 0
    %366 = vmatpush2.bf16.msra.mxu0 0
    %367 = vmatprep.mubr.bf16.mxu0 0
    %368 = vmatmul.mubr.bf16.gmra.mxu0 %v263
    %v369 = vpop.f32.mrf.mxu0
    %v370 = vadd.f32 %v285, %v369
    %v371 = vpop.f32.mrf.mxu0
    %v372 = vpop.f32.mrf.mxu0
    %v373 = vpop.f32.mrf.mxu0
    %374 = vdwg.mxu0
    %375 = vst [vmem:[%s7] sm:$0x3] %v370
    // Predicated region
    $region46: #{forward.1} parent=1 // pred_check
      _
    $region47: #{forward.1} parent=1 // pred_check_branch
      %377 = sbr.rel (0) target = $region49
    $region48: #{forward.1} parent=1 // pred_region
      _
    $region49: #{forward.1} parent=1 // pred_fallthru
      _
    // Predicated region
    $region50: #{forward.1} parent=1 // pred_check
      _
    $region51: #{forward.1} parent=1 // pred_check_branch
      %379 = sbr.rel (0) target = $region53
    $region52: #{forward.1} parent=1 // pred_region
      _
    $region53: #{forward.1} parent=1 // pred_fallthru
      _
    %380 = vsyncpa [#allocation3], 1
    %381 = vsyncpa [#allocation5], 1
    %382 = vsyncpa [#allocation8], 1

</llo_original>
